<compile_context>
chip_gen: v5e
topology: v5e:2x2
jax: 0.10.0
libtpu: 0.0.40
codegen_flags: <defaults>
</compile_context>

<pallas_src>
import jax
import jax.numpy as jnp
from jax import lax
from jax.experimental import pallas as pl
from jax.experimental.pallas import tpu as pltpu


def _round_up(x, m):
    return ((x + m - 1) // m) * m


def _knn_sample_kernel(tbl_ref, loc_ref, idx_ref, neg_ref, rows_ref):
    """One tile of R check-ins.

    tbl_ref  : (n_planes*num_nearest, num_locs) f32 — byte planes of knn_table.T,
               VMEM-resident (constant index_map → DMA'd once, reused by all tiles).
    loc_ref  : (1, R) int32 — target location id per check-in (lane-dense).
    idx_ref  : (k, R) int32 — uniform positions in [0, num_nearest).
    neg_ref  : (k, R) int32 — sampled negative ids (transposed, lane-dense store).
    rows_ref : (num_nearest, R) int32 VMEM scratch — gathered KNN rows for this tile.
    """
    num_nearest, r = rows_ref.shape
    num_locs = tbl_ref.shape[1]
    n_planes = tbl_ref.shape[0] // num_nearest
    k = idx_ref.shape[0]

    # ---- KNN row gather, in-kernel (replaces the wrapper-side HBM gather+.T). ----
    # one_hot(loc) @ byte-planes on the MXU. Each plane value is < 256 (exact in
    # bf16/f32 at any MXU precision) and every one-hot column has a single 1.0,
    # so the matmul is an exact integer gather.
    loc = loc_ref[...]                                               # (1, R)
    l_iota = lax.broadcasted_iota(jnp.int32, (num_locs, r), 0)
    onehot = jnp.where(l_iota == loc, jnp.float32(1), jnp.float32(0))  # (num_locs, R)
    planes = jnp.dot(tbl_ref[...], onehot,
                     preferred_element_type=jnp.float32)             # (P*num_nearest, R)
    rows = planes[0:num_nearest, :].astype(jnp.int32)
    for p in range(1, n_planes):                                     # static, usually 1-2
        part = planes[p * num_nearest:(p + 1) * num_nearest, :].astype(jnp.int32)
        rows = rows + (part << (8 * p))
    rows_ref[...] = rows                                             # stage once in VMEM

    # ---- per-sample position pick: exact int32 select + sublane reduce (VPU/XLU). --
    # Kept as an unrolled per-j loop: the fused (k, num_nearest, R) alternative
    # would exceed the 64-vreg file and spill on the VALU-bound path.
    n_iota = lax.broadcasted_iota(jnp.int32, (num_nearest, r), 0)
    parts = []
    for j in range(k):                                               # k is small & static
        idx_j = idx_ref[pl.ds(j, 1), :]                              # (1, R)
        sel = jnp.where(n_iota == idx_j, rows_ref[...], 0)           # exact int32 select
        parts.append(jnp.sum(sel, axis=0, keepdims=True))            # sublane reduce
    neg_ref[...] = jnp.concatenate(parts, axis=0)                    # one lane-dense store


def knn_test_sampler(trg_seq, k, knn_table, seed=0):
    """Pallas equivalent of KNNtestSampler.forward(trg_seq, k, user).

    trg_seq   : (seq_len, F) int32 check-ins; column 1 is the target location id.
    k         : number of negative samples per check-in.
    knn_table : (num_locs, num_nearest) int32 precomputed KNN ids (the query_sys).
    seed      : RNG seed; thread a fresh value per call if used inside a loop
                (the PyTorch module advances a global RNG).
    Returns (neg_samples (seq_len, k) int32, probs (seq_len, k) float32).
    """
    seq_len = trg_seq.shape[0]
    num_locs, num_nearest = knn_table.shape

    # Byte planes needed to represent any location id (table entries are < num_locs).
    n_planes = max(1, (int(num_locs - 1).bit_length() + 7) // 8)

    # ---- tile-size selection (per perf feedback) --------------------------------
    per_row_bytes = 4 * (num_nearest * (1 + n_planes) + num_locs + 2 * (1 + 2 * k))
    r_budget = max(128, ((12 * 2 ** 20) // per_row_bytes) // 128 * 128)   # VMEM working set
    r_two_steps = max(128, _round_up(-(-seq_len // 2), 128))              # >= 2 grid steps
    R = int(min(2048, r_budget, r_two_steps))
    s_pad = _round_up(seq_len, R)

    # ---- one-time table prep (num_locs x num_nearest, NOT per check-in) ---------
    # knn_table is the only table in HBM; it is DMA'd to VMEM once per core and
    # reused by every grid step. The per-check-in (num_nearest x seq_len) gather
    # and transpose HBM passes of the previous version are gone.
    # TODO(synk): if n_planes*num_nearest*num_locs*4 B does not fit VMEM (very large
    # location vocabularies), fall back to an HBM-resident table (memory_space=pl.ANY)
    # with a manual per-tile row-gather DMA pipeline (feedback option (c)).
    tbl_t = knn_table.astype(jnp.int32).T                      # (num_nearest, num_locs)
    table_planes = jnp.concatenate(
        [jnp.right_shift(tbl_t, 8 * p) & 0xFF for p in range(n_planes)], axis=0
    ).astype(jnp.float32)                                      # (P*num_nearest, num_locs)

    trg_locs = trg_seq[:, 1].astype(jnp.int32)                 # check_in[1] == trg_loc
    trg_locs = jnp.pad(trg_locs, (0, s_pad - seq_len))[None, :]  # (1, s_pad); pad loc 0

    # Unbiased uniform picks with replacement (np.random.choice semantics).
    idx = jax.random.randint(jax.random.PRNGKey(seed), (k, s_pad), 0, num_nearest,
                             dtype=jnp.int32)                  # (k, s_pad)

    # Explicit VMEM limit: generous headroom, but valid on every generation
    # (v5e default scoped VMEM is 16 MiB; v7x physical is 64 MiB per TC).
    table_bytes = int(table_planes.size) * 4
    per_tile_bytes = (2 * table_bytes                              # worst-case dbl buffer
                      + 2 * (1 + 2 * k) * R * 4                    # loc/idx/out blocks
                      + num_nearest * R * 4                        # rows scratch
                      + (n_planes * num_nearest + num_locs) * R * 4)  # matmul/one-hot temps
    vmem_limit = int(min(48 * 2 ** 20, max(32 * 2 ** 20, 2 * per_tile_bytes)))

    neg_t = pl.pallas_call(
        _knn_sample_kernel,
        out_shape=jax.ShapeDtypeStruct((k, s_pad), jnp.int32),
        grid=(s_pad // R,),
        in_specs=[
            # VMEM-resident table: constant block index -> fetched once, reused.
            pl.BlockSpec((n_planes * num_nearest, num_locs), lambda t: (0, 0)),
            pl.BlockSpec((1, R), lambda t: (0, t)),
            pl.BlockSpec((k, R), lambda t: (0, t)),
        ],
        out_specs=pl.BlockSpec((k, R), lambda t: (0, t)),
        scratch_shapes=[pltpu.VMEM((num_nearest, R), jnp.int32)],
        compiler_params=pltpu.CompilerParams(
            dimension_semantics=("parallel",),
            vmem_limit_bytes=vmem_limit,
        ),
    )(table_planes, trg_locs, idx)

    neg_samples = neg_t.T[:seq_len, :]              # (seq_len, k); only k*seq_len*4 B
    probs = jnp.ones((seq_len, k), jnp.float32)     # constant; no kernel traffic
    # TODO(synk): PyTorch returns torch.long (int64); JAX x64 is disabled by default,
    # so location ids are returned as int32.
    return neg_samples, probs


if __name__ == "__main__":
    key = jax.random.PRNGKey(0)

    # Small synthetic "query system": deterministic KNN table.
    num_locs, num_nearest = 64, 128
    seq_len, k = 150, 8
    knn_table = ((jnp.arange(num_locs, dtype=jnp.int32)[:, None] * 3
                  + jnp.arange(num_nearest, dtype=jnp.int32)[None, :] * 5)
                 % num_locs).astype(jnp.int32)

    # trg_seq: (seq_len, 3) check-ins = (user, loc, time); column 1 is the loc id.
    trg_seq = jax.random.randint(key, (seq_len, 3), 0, num_locs, dtype=jnp.int32)

    neg_samples, probs = knn_test_sampler(trg_seq, k, knn_table, seed=0)
    jax.block_until_ready((neg_samples, probs))

    # Sanity: every negative sample must come from its check-in's KNN row, and
    # probs must be all ones (exact semantics of the reference module).
    trg_locs = trg_seq[:, 1]
    rows = knn_table[trg_locs]                                     # (seq_len, num_nearest)
    contained = (neg_samples[:, :, None] == rows[:, None, :]).any(-1).all()
    assert neg_samples.shape == (seq_len, k) and neg_samples.dtype == jnp.int32
    assert probs.shape == (seq_len, k) and probs.dtype == jnp.float32
    assert bool(contained), "sampled ids not in KNN rows"
    assert bool(jnp.all(probs == 1.0)), "probs must be all ones"

    print("KERNEL_OK")
</pallas_src>

<mosaic_0001>
module attributes {stable_mosaic.version = 11 : i64} {
  func.func @_knn_sample_kernel(%arg0: i32, %arg1: memref<128x64xf32, #tpu.memory_space<vmem>>, %arg2: memref<1x128xi32, #tpu.memory_space<vmem>>, %arg3: memref<8x128xi32, #tpu.memory_space<vmem>>, %arg4: memref<8x128xi32, #tpu.memory_space<vmem>>, %arg5: memref<128x128xi32, #tpu.memory_space<vmem>>) attributes {dimension_semantics = [#tpu.dimension_semantics<parallel>], iteration_bounds = array<i64: 2>, scalar_prefetch = 0 : i64, scratch_operands = 1 : i64, tpu.core_type = #tpu.core_type<tc>, window_params = [{pipeline_mode = #tpu.pipeline_mode<synchronous>, transform_indices = @transform_0, window_bounds = array<i64: 128, 64>}, {transform_indices = @transform_1, window_bounds = array<i64: 1, 128>}, {transform_indices = @transform_2, window_bounds = array<i64: 8, 128>}, {transform_indices = @transform_3, window_bounds = array<i64: 8, 128>}]} {
    %c0 = arith.constant 0 : index
    %c0_0 = arith.constant 0 : index
    %0 = vector.load %arg2[%c0, %c0_0] : memref<1x128xi32, #tpu.memory_space<vmem>>, vector<1x128xi32>
    %1 = tpu.iota {dimensions = array<i32: 0>} : vector<64x128xi32>
    %2 = vector.broadcast %0 : vector<1x128xi32> to vector<64x128xi32>
    %3 = arith.cmpi eq, %1, %2 : vector<64x128xi32>
    %cst = arith.constant 1.000000e+00 : f32
    %cst_1 = arith.constant 0.000000e+00 : f32
    %4 = vector.broadcast %cst : f32 to vector<64x128xf32>
    %5 = vector.broadcast %cst_1 : f32 to vector<64x128xf32>
    %6 = arith.select %3, %4, %5 : vector<64x128xi1>, vector<64x128xf32>
    %c0_2 = arith.constant 0 : index
    %c0_3 = arith.constant 0 : index
    %7 = vector.load %arg1[%c0_2, %c0_3] : memref<128x64xf32, #tpu.memory_space<vmem>>, vector<128x64xf32>
    %cst_4 = arith.constant dense<0.000000e+00> : vector<128x128xf32>
    %8 = tpu.matmul %7, %6, %cst_4 {dimension_numbers = #tpu.dot_dimension_numbers<[1], [0], [0], [1], [0, 0, 1, 1], [], []>} : vector<128x64xf32>, vector<64x128xf32>, vector<128x128xf32> -> vector<128x128xf32>
    %9 = arith.fptosi %8 : vector<128x128xf32> to vector<128x128xi32>
    %c0_5 = arith.constant 0 : index
    %c0_6 = arith.constant 0 : index
    %10 = vector.load %arg5[%c0_5, %c0_6] : memref<128x128xi32, #tpu.memory_space<vmem>>, vector<128x128xi32>
    tpu.vector_store %arg5[%c0_5, %c0_6], %9 {strides = array<i32>} : memref<128x128xi32, #tpu.memory_space<vmem>>, vector<128x128xi32>,
    %11 = tpu.iota {dimensions = array<i32: 0>} : vector<128x128xi32>
    %c0_7 = arith.constant 0 : index
    %c0_8 = arith.constant 0 : index
    %12 = vector.load %arg3[%c0_7, %c0_8] : memref<8x128xi32, #tpu.memory_space<vmem>>, vector<1x128xi32>
    %13 = vector.broadcast %12 : vector<1x128xi32> to vector<128x128xi32>
    %14 = arith.cmpi eq, %11, %13 : vector<128x128xi32>
    %c0_9 = arith.constant 0 : index
    %c0_10 = arith.constant 0 : index
    %15 = vector.load %arg5[%c0_9, %c0_10] : memref<128x128xi32, #tpu.memory_space<vmem>>, vector<128x128xi32>
    %c0_i32 = arith.constant 0 : i32
    %16 = vector.broadcast %c0_i32 : i32 to vector<128x128xi32>
    %17 = arith.select %14, %15, %16 : vector<128x128xi1>, vector<128x128xi32>
    %cst_11 = arith.constant dense<0> : vector<128xi32>
    %18 = vector.multi_reduction <add>, %17, %cst_11 [0] : vector<128x128xi32> to vector<128xi32>
    %19 = vector.shape_cast %18 : vector<128xi32> to vector<1x128xi32>
    %c1 = arith.constant 1 : index
    %c0_12 = arith.constant 0 : index
    %20 = vector.load %arg3[%c1, %c0_12] : memref<8x128xi32, #tpu.memory_space<vmem>>, vector<1x128xi32>
    %21 = vector.broadcast %20 : vector<1x128xi32> to vector<128x128xi32>
    %22 = arith.cmpi eq, %11, %21 : vector<128x128xi32>
    %c0_13 = arith.constant 0 : index
    %c0_14 = arith.constant 0 : index
    %23 = vector.load %arg5[%c0_13, %c0_14] : memref<128x128xi32, #tpu.memory_space<vmem>>, vector<128x128xi32>
    %c0_i32_15 = arith.constant 0 : i32
    %24 = vector.broadcast %c0_i32_15 : i32 to vector<128x128xi32>
    %25 = arith.select %22, %23, %24 : vector<128x128xi1>, vector<128x128xi32>
    %cst_16 = arith.constant dense<0> : vector<128xi32>
    %26 = vector.multi_reduction <add>, %25, %cst_16 [0] : vector<128x128xi32> to vector<128xi32>
    %27 = vector.shape_cast %26 : vector<128xi32> to vector<1x128xi32>
    %c2 = arith.constant 2 : index
    %c0_17 = arith.constant 0 : index
    %28 = vector.load %arg3[%c2, %c0_17] : memref<8x128xi32, #tpu.memory_space<vmem>>, vector<1x128xi32>
    %29 = vector.broadcast %28 : vector<1x128xi32> to vector<128x128xi32>
    %30 = arith.cmpi eq, %11, %29 : vector<128x128xi32>
    %c0_18 = arith.constant 0 : index
    %c0_19 = arith.constant 0 : index
    %31 = vector.load %arg5[%c0_18, %c0_19] : memref<128x128xi32, #tpu.memory_space<vmem>>, vector<128x128xi32>
    %c0_i32_20 = arith.constant 0 : i32
    %32 = vector.broadcast %c0_i32_20 : i32 to vector<128x128xi32>
    %33 = arith.select %30, %31, %32 : vector<128x128xi1>, vector<128x128xi32>
    %cst_21 = arith.constant dense<0> : vector<128xi32>
    %34 = vector.multi_reduction <add>, %33, %cst_21 [0] : vector<128x128xi32> to vector<128xi32>
    %35 = vector.shape_cast %34 : vector<128xi32> to vector<1x128xi32>
    %c3 = arith.constant 3 : index
    %c0_22 = arith.constant 0 : index
    %36 = vector.load %arg3[%c3, %c0_22] : memref<8x128xi32, #tpu.memory_space<vmem>>, vector<1x128xi32>
    %37 = vector.broadcast %36 : vector<1x128xi32> to vector<128x128xi32>
    %38 = arith.cmpi eq, %11, %37 : vector<128x128xi32>
    %c0_23 = arith.constant 0 : index
    %c0_24 = arith.constant 0 : index
    %39 = vector.load %arg5[%c0_23, %c0_24] : memref<128x128xi32, #tpu.memory_space<vmem>>, vector<128x128xi32>
    %c0_i32_25 = arith.constant 0 : i32
    %40 = vector.broadcast %c0_i32_25 : i32 to vector<128x128xi32>
    %41 = arith.select %38, %39, %40 : vector<128x128xi1>, vector<128x128xi32>
    %cst_26 = arith.constant dense<0> : vector<128xi32>
    %42 = vector.multi_reduction <add>, %41, %cst_26 [0] : vector<128x128xi32> to vector<128xi32>
    %43 = vector.shape_cast %42 : vector<128xi32> to vector<1x128xi32>
    %c4 = arith.constant 4 : index
    %c0_27 = arith.constant 0 : index
    %44 = vector.load %arg3[%c4, %c0_27] : memref<8x128xi32, #tpu.memory_space<vmem>>, vector<1x128xi32>
    %45 = vector.broadcast %44 : vector<1x128xi32> to vector<128x128xi32>
    %46 = arith.cmpi eq, %11, %45 : vector<128x128xi32>
    %c0_28 = arith.constant 0 : index
    %c0_29 = arith.constant 0 : index
    %47 = vector.load %arg5[%c0_28, %c0_29] : memref<128x128xi32, #tpu.memory_space<vmem>>, vector<128x128xi32>
    %c0_i32_30 = arith.constant 0 : i32
    %48 = vector.broadcast %c0_i32_30 : i32 to vector<128x128xi32>
    %49 = arith.select %46, %47, %48 : vector<128x128xi1>, vector<128x128xi32>
    %cst_31 = arith.constant dense<0> : vector<128xi32>
    %50 = vector.multi_reduction <add>, %49, %cst_31 [0] : vector<128x128xi32> to vector<128xi32>
    %51 = vector.shape_cast %50 : vector<128xi32> to vector<1x128xi32>
    %c5 = arith.constant 5 : index
    %c0_32 = arith.constant 0 : index
    %52 = vector.load %arg3[%c5, %c0_32] : memref<8x128xi32, #tpu.memory_space<vmem>>, vector<1x128xi32>
    %53 = vector.broadcast %52 : vector<1x128xi32> to vector<128x128xi32>
    %54 = arith.cmpi eq, %11, %53 : vector<128x128xi32>
    %c0_33 = arith.constant 0 : index
    %c0_34 = arith.constant 0 : index
    %55 = vector.load %arg5[%c0_33, %c0_34] : memref<128x128xi32, #tpu.memory_space<vmem>>, vector<128x128xi32>
    %c0_i32_35 = arith.constant 0 : i32
    %56 = vector.broadcast %c0_i32_35 : i32 to vector<128x128xi32>
    %57 = arith.select %54, %55, %56 : vector<128x128xi1>, vector<128x128xi32>
    %cst_36 = arith.constant dense<0> : vector<128xi32>
    %58 = vector.multi_reduction <add>, %57, %cst_36 [0] : vector<128x128xi32> to vector<128xi32>
    %59 = vector.shape_cast %58 : vector<128xi32> to vector<1x128xi32>
    %c6 = arith.constant 6 : index
    %c0_37 = arith.constant 0 : index
    %60 = vector.load %arg3[%c6, %c0_37] : memref<8x128xi32, #tpu.memory_space<vmem>>, vector<1x128xi32>
    %61 = vector.broadcast %60 : vector<1x128xi32> to vector<128x128xi32>
    %62 = arith.cmpi eq, %11, %61 : vector<128x128xi32>
    %c0_38 = arith.constant 0 : index
    %c0_39 = arith.constant 0 : index
    %63 = vector.load %arg5[%c0_38, %c0_39] : memref<128x128xi32, #tpu.memory_space<vmem>>, vector<128x128xi32>
    %c0_i32_40 = arith.constant 0 : i32
    %64 = vector.broadcast %c0_i32_40 : i32 to vector<128x128xi32>
    %65 = arith.select %62, %63, %64 : vector<128x128xi1>, vector<128x128xi32>
    %cst_41 = arith.constant dense<0> : vector<128xi32>
    %66 = vector.multi_reduction <add>, %65, %cst_41 [0] : vector<128x128xi32> to vector<128xi32>
    %67 = vector.shape_cast %66 : vector<128xi32> to vector<1x128xi32>
    %c7 = arith.constant 7 : index
    %c0_42 = arith.constant 0 : index
    %68 = vector.load %arg3[%c7, %c0_42] : memref<8x128xi32, #tpu.memory_space<vmem>>, vector<1x128xi32>
    %69 = vector.broadcast %68 : vector<1x128xi32> to vector<128x128xi32>
    %70 = arith.cmpi eq, %11, %69 : vector<128x128xi32>
    %c0_43 = arith.constant 0 : index
    %c0_44 = arith.constant 0 : index
    %71 = vector.load %arg5[%c0_43, %c0_44] : memref<128x128xi32, #tpu.memory_space<vmem>>, vector<128x128xi32>
    %c0_i32_45 = arith.constant 0 : i32
    %72 = vector.broadcast %c0_i32_45 : i32 to vector<128x128xi32>
    %73 = arith.select %70, %71, %72 : vector<128x128xi1>, vector<128x128xi32>
    %cst_46 = arith.constant dense<0> : vector<128xi32>
    %74 = vector.multi_reduction <add>, %73, %cst_46 [0] : vector<128x128xi32> to vector<128xi32>
    %75 = vector.shape_cast %74 : vector<128xi32> to vector<1x128xi32>
    %76 = tpu.concatenate %19, %27, %35, %43, %51, %59, %67, %75 in 0 : vector<1x128xi32>, vector<1x128xi32>, vector<1x128xi32>, vector<1x128xi32>, vector<1x128xi32>, vector<1x128xi32>, vector<1x128xi32>, vector<1x128xi32> -> vector<8x128xi32>
    %c0_47 = arith.constant 0 : index
    %c0_48 = arith.constant 0 : index
    %77 = vector.load %arg4[%c0_47, %c0_48] : memref<8x128xi32, #tpu.memory_space<vmem>>, vector<8x128xi32>
    tpu.vector_store %arg4[%c0_47, %c0_48], %76 {strides = array<i32>} : memref<8x128xi32, #tpu.memory_space<vmem>>, vector<8x128xi32>,
    return
  }
  func.func @transform_0(%arg0: i32) -> (i32, i32) {
    %c0_i32 = arith.constant 0 : i32
    %c0_i32_0 = arith.constant 0 : i32
    %c0_i32_1 = arith.constant 0 : i32
    return %c0_i32, %c0_i32_0 : i32, i32
  }
  func.func @transform_1(%arg0: i32) -> (i32, i32) {
    %c0_i32 = arith.constant 0 : i32
    %c0_i32_0 = arith.constant 0 : i32
    return %c0_i32, %arg0 : i32, i32
  }
  func.func @transform_2(%arg0: i32) -> (i32, i32) {
    %c0_i32 = arith.constant 0 : i32
    %c0_i32_0 = arith.constant 0 : i32
    return %c0_i32, %arg0 : i32, i32
  }
  func.func @transform_3(%arg0: i32) -> (i32, i32) {
    %c0_i32 = arith.constant 0 : i32
    %c0_i32_0 = arith.constant 0 : i32
    return %c0_i32, %arg0 : i32, i32
  }
}

</mosaic_0001>

<llo_original>
// kernel: tpu_custom_call.1
$region0: #{tpu_custom_call.1}
  #allocation0 [shape = 'u32[]', space=smem, size = 0x4, offset = 0x4, fixed_abs, tag = 'smem constant byte address 0x4 - core index']
  #allocation1 [shape = 'u32[72,128]{1,0:T(1,128)}', space=vmem, size = 0x9000, scoped, tag = 'internal scratch']
  #allocation2 [shape = 's32[128,128]{1,0:T(8,128)}', space=vmem, size = 0x10000, scoped, tag = 'scratch operand']
  %s0 = inlined_call_operand.vmem [shape: f32[128,64], index: 0, kind: input, shape index: {}]
  %s1 = inlined_call_operand.vmem [shape: s32[1,256], index: 1, kind: input, shape index: {}]
  %s2 = inlined_call_operand.vmem [shape: s32[8,256], index: 2, kind: input, shape index: {}]
  %s3 = inlined_call_operand.hbm [shape: s32[8,256], index: 3, kind: output, shape index: {}]
  %s4 = sld [smem:[#allocation0]]
  $region45: #{tpu_custom_call.1} parent=0
    _
  %s6 = ssub.s32 1, %s4
  %s7 = scalar_select 0, %s6, %s4
  $region1: #{tpu_custom_call.1} parent=0
    #allocation3 [shape = 'u8[8192]{0}', space=vmem, size = 0x2000, scoped, tag = 'output window, operand 0']
    #allocation4 [shape = 's32[2]{0}', space=sflag, size = 0x8, scoped, tag = 'scoped memory for tpu_custom_call.1']
    %8 = vsyncpa [#allocation4], 0
    %s9 = scalar_lea.sflag [#allocation4], 1
    %10 = vsyncpa %s9, 0
    loop: start=0, step=1, limit=4
    $region2: #{tpu_custom_call.1} parent=1 // loop_pre_header
      _
    $region3: #{tpu_custom_call.1} parent=1 // loop_header
      %s12 = sphi 0, %s16
      %p13 = scmp.ge.s32.totalorder %s12, 4
      %s20 = sphi 0, %s20
      %s22 = sphi 0, %s20
      %s23 = sphi 0, %s22
      %s37 = sphi 0, %s23
      %s43 = sphi 0, %s45
      %s46 = sphi 0, %s43
      %s47 = sphi 0, %s46
      %s63 = sphi 0, %s47
      %s69 = sphi 0, %s71
      %s72 = sphi 0, %s69
      %s73 = sphi 0, %s72
      %s89 = sphi 0, %s73
      %s95 = sphi 0, %s97
      %s98 = sphi 0, %s95
      %s99 = sphi 0, %s98
      %s115 = sphi 0, %s99
    $region4: #{tpu_custom_call.1} parent=1 // loop_header_branch
      %15 = sbr.rel (%p13) target = $region8
    $region5: #{tpu_custom_call.1} parent=1 // loop_body
      %s17 = ssub.s32 %s12, 1
      %s18 = ssub.s32 %s12, 2
      %s19 = sadd.s32 %s12, 1
      %s21 = sadd.s32 %s20, 1
      %p24 = scmp.eq.s32.totalorder %s12, 1
      %p25 = scmp.ne.s32.totalorder %s20, %s22
      %p26 = scmp.eq.s32.totalorder %s12, 0
      %p27 = por %p25, %p26
      %p28 = scmp.ne.s32.totalorder %s20, %s22
      %p29 = scmp.eq.s32.totalorder %s17, 1
      %p30 = por %p28, %p29
      %p31 = scmp.ne.s32.totalorder %s22, %s23
      %p32 = scmp.eq.s32.totalorder %s17, 0
      %p33 = por %p31, %p32
      %p34 = scmp.ne.s32.totalorder %s22, %s23
      %p35 = scmp.eq.s32.totalorder %s18, 1
      %p36 = por %p34, %p35
      %p38 = scmp.ne.s32.totalorder %s23, %s37
      %p39 = scmp.eq.s32.totalorder %s18, 0
      %p40 = por %p38, %p39
      %s41 = ssub.s32 %s12, %s19
      %p42 = scmp.eq.s32.totalorder %s41, 0
      %s44 = sadd.s32 %s43, 1
      %s45 = scalar_select %p42, %s43, %s44
      %p48 = pneg %p42
      %p49 = scmp.eq.s32.totalorder %s12, 1
      %p50 = por %p48, %p49
      %p51 = scmp.ne.s32.totalorder %s43, %s46
      %p52 = scmp.eq.s32.totalorder %s12, 0
      %p53 = por %p51, %p52
      %p54 = scmp.ne.s32.totalorder %s43, %s46
      %p55 = scmp.eq.s32.totalorder %s17, 1
      %p56 = por %p54, %p55
      %p57 = scmp.ne.s32.totalorder %s46, %s47
      %p58 = scmp.eq.s32.totalorder %s17, 0
      %p59 = por %p57, %p58
      %p60 = scmp.ne.s32.totalorder %s46, %s47
      %p61 = scmp.eq.s32.totalorder %s18, 1
      %p62 = por %p60, %p61
      %p64 = scmp.ne.s32.totalorder %s47, %s63
      %p65 = scmp.eq.s32.totalorder %s18, 0
      %p66 = por %p64, %p65
      %s67 = ssub.s32 %s12, %s19
      %p68 = scmp.eq.s32.totalorder %s67, 0
      %s70 = sadd.s32 %s69, 1
      %s71 = scalar_select %p68, %s69, %s70
      %p74 = pneg %p68
      %p75 = scmp.eq.s32.totalorder %s12, 1
      %p76 = por %p74, %p75
      %p77 = scmp.ne.s32.totalorder %s69, %s72
      %p78 = scmp.eq.s32.totalorder %s12, 0
      %p79 = por %p77, %p78
      %p80 = scmp.ne.s32.totalorder %s69, %s72
      %p81 = scmp.eq.s32.totalorder %s17, 1
      %p82 = por %p80, %p81
      %p83 = scmp.ne.s32.totalorder %s72, %s73
      %p84 = scmp.eq.s32.totalorder %s17, 0
      %p85 = por %p83, %p84
      %p86 = scmp.ne.s32.totalorder %s72, %s73
      %p87 = scmp.eq.s32.totalorder %s18, 1
      %p88 = por %p86, %p87
      %p90 = scmp.ne.s32.totalorder %s73, %s89
      %p91 = scmp.eq.s32.totalorder %s18, 0
      %p92 = por %p90, %p91
      %s93 = ssub.s32 %s12, %s19
      %p94 = scmp.eq.s32.totalorder %s93, 0
      %s96 = sadd.s32 %s95, 1
      %s97 = scalar_select %p94, %s95, %s96
      %p100 = pneg %p94
      %p101 = scmp.eq.s32.totalorder %s12, 1
      %p102 = por %p100, %p101
      %p103 = scmp.ne.s32.totalorder %s95, %s98
      %p104 = scmp.eq.s32.totalorder %s12, 0
      %p105 = por %p103, %p104
      %p106 = scmp.ne.s32.totalorder %s95, %s98
      %p107 = scmp.eq.s32.totalorder %s17, 1
      %p108 = por %p106, %p107
      %p109 = scmp.ne.s32.totalorder %s98, %s99
      %p110 = scmp.eq.s32.totalorder %s17, 0
      %p111 = por %p109, %p110
      %p112 = scmp.ne.s32.totalorder %s98, %s99
      %p113 = scmp.eq.s32.totalorder %s18, 1
      %p114 = por %p112, %p113
      %p116 = scmp.ne.s32.totalorder %s99, %s115
      %p117 = scmp.eq.s32.totalorder %s18, 0
      %p118 = por %p116, %p117
      %p119 = scmp.le.s32.totalorder 1, %s12
      %p120 = scmp.lt.s32.totalorder %s12, 3
      %p121 = pnand %p119, %p120
      %p122 = pneg %p121
      // Predicated region
      $region9: #{tpu_custom_call.1} parent=5 // pred_check
        _
      $region10: #{tpu_custom_call.1} parent=5 // pred_check_branch
        %124 = sbr.rel (%p121) target = $region12
      $region11: #{tpu_custom_call.1} parent=5 // pred_region
        %s125 = ssub.s32 %s12, 1
        // Predicated region
        $region13: #{tpu_custom_call.1} parent=11 // pred_check
          %p126 = pneg %p33
        $region14: #{tpu_custom_call.1} parent=11 // pred_check_branch
          %128 = sbr.rel (%p126) target = $region16
        $region15: #{tpu_custom_call.1} parent=11 // pred_region
          _
        $region16: #{tpu_custom_call.1} parent=11 // pred_fallthru
          _
      $region12: #{tpu_custom_call.1} parent=5 // pred_fallthru
        _
      %p129 = scmp.lt.s32.totalorder %s12, 2
      // Predicated region
      $region17: #{tpu_custom_call.1} parent=5 // pred_check
        %p130 = pneg %p129
      $region18: #{tpu_custom_call.1} parent=5 // pred_check_branch
        %132 = sbr.rel (%p130) target = $region20
      $region19: #{tpu_custom_call.1} parent=5 // pred_region
        // Predicated region
        $region21: #{tpu_custom_call.1} parent=19 // pred_check
          %p133 = pneg %p53
        $region22: #{tpu_custom_call.1} parent=19 // pred_check_branch
          %135 = sbr.rel (%p133) target = $region24
        $region23: #{tpu_custom_call.1} parent=19 // pred_region
          %p136 = scmp.lt.s32.totalorder %s12, 1
          %s137 = scalar_select %p136, %s12, 1
          %s138 = scalar_lea.vmem %s1, %s137
        $region24: #{tpu_custom_call.1} parent=19 // pred_fallthru
          _
        // Predicated region
        $region25: #{tpu_custom_call.1} parent=19 // pred_check
          %p139 = pneg %p79
        $region26: #{tpu_custom_call.1} parent=19 // pred_check_branch
          %141 = sbr.rel (%p139) target = $region28
        $region27: #{tpu_custom_call.1} parent=19 // pred_region
          %p142 = scmp.lt.s32.totalorder %s12, 1
          %s143 = scalar_select %p142, %s12, 1
          %s144 = smul.addr %s143, 8
          %s145 = scalar_lea.vmem %s2, %s144
        $region28: #{tpu_custom_call.1} parent=19 // pred_fallthru
          _
      $region20: #{tpu_custom_call.1} parent=5 // pred_fallthru
        _
      %p146 = scmp.le.s32.totalorder 1, %s12
      %p147 = scmp.lt.s32.totalorder %s12, 3
      %p148 = pnand %p146, %p147
      %p149 = pneg %p148
      // Predicated region
      $region29: #{tpu_custom_call.1} parent=5 // pred_check
        _
      $region30: #{tpu_custom_call.1} parent=5 // pred_check_branch
        %151 = sbr.rel (%p148) target = $region32
      $region31: #{tpu_custom_call.1} parent=5 // pred_region
        %s152 = ssub.s32 %s12, 1
        %p153 = pneg %p33
        %p154 = pneg %p30
        %p155 = scmp.lt.s32.totalorder %s17, 1
        %s156 = scalar_select %p155, %s17, 1
        %s157 = scalar_lea.vmem %s1, %s156
        %p158 = pneg %p59
        %p159 = pneg %p56
        %p160 = scmp.lt.s32.totalorder %s17, 1
        %s161 = scalar_select %p160, %s17, 1
        %s162 = smul.addr %s161, 8
        %s163 = scalar_lea.vmem %s2, %s162
        %p164 = pneg %p85
        %p165 = pneg %p82
        %p166 = pneg %p111
        %p167 = pneg %p108
        %s168 = sand.u32 %s98, 1
        %s169 = scalar_lea.sflag [#allocation4], %s168
        %s170 = sand.u32 %s98, 1
        %s171 = smul.addr %s170, 8
        %s172 = scalar_lea.vmem [#allocation3], %s171
        %p173 = scmp.lt.s32.totalorder %s17, 1
        %s174 = scalar_select %p173, %s17, 1
        %s175 = scalar_lea.vmem %s1, %s174
        %p176 = scmp.lt.s32.totalorder %s17, 1
        %s177 = scalar_select %p176, %s17, 1
        %s178 = smul.addr %s177, 8
        %s179 = scalar_lea.vmem %s2, %s178
        %v180 = vld [vmem:[%s175] sm:$0x1]
        %v181 = vlaneseq
        %v182 = vshrl.u32 %v181, 7
        %v183 = vadd.s32 %v182, 8
        %v184 = vadd.s32 %v182, 16
        %v185 = vadd.s32 %v182, 24
        %v186 = vadd.s32 %v182, 32
        %v187 = vadd.s32 %v182, 40
        %v188 = vadd.s32 %v182, 48
        %v189 = vadd.s32 %v182, 56
        %v190 = vperm.slane %v180, 0
        %vm191 = vcmp.eq.s32.totalorder %v182, %v190
        %vm192 = vcmp.eq.s32.totalorder %v183, %v190
        %vm193 = vcmp.eq.s32.totalorder %v184, %v190
        %vm194 = vcmp.eq.s32.totalorder %v185, %v190
        %vm195 = vcmp.eq.s32.totalorder %v186, %v190
        %vm196 = vcmp.eq.s32.totalorder %v187, %v190
        %vm197 = vcmp.eq.s32.totalorder %v188, %v190
        %vm198 = vcmp.eq.s32.totalorder %v189, %v190
        %v199 = vsel %vm191, 1.0, 0.0
        %v200 = vsel %vm192, 1.0, 0.0
        %v201 = vsel %vm193, 1.0, 0.0
        %v202 = vsel %vm194, 1.0, 0.0
        %v203 = vsel %vm195, 1.0, 0.0
        %v204 = vsel %vm196, 1.0, 0.0
        %v205 = vsel %vm197, 1.0, 0.0
        %v206 = vsel %vm198, 1.0, 0.0
        %v207 = vld [vmem:[%s0] sm:$0xff]
        %v208 = vld [vmem:[%s0 + $0x8] sm:$0xff]
        %v209 = vld [vmem:[%s0 + $0x10] sm:$0xff]
        %v210 = vld [vmem:[%s0 + $0x18] sm:$0xff]
        %v211 = vld [vmem:[%s0 + $0x20] sm:$0xff]
        %v212 = vld [vmem:[%s0 + $0x28] sm:$0xff]
        %v213 = vld [vmem:[%s0 + $0x30] sm:$0xff]
        %v214 = vld [vmem:[%s0 + $0x38] sm:$0xff]
        %v215 = vld [vmem:[%s0 + $0x40] sm:$0xff]
        %v216 = vld [vmem:[%s0 + $0x48] sm:$0xff]
        %v217 = vld [vmem:[%s0 + $0x50] sm:$0xff]
        %v218 = vld [vmem:[%s0 + $0x58] sm:$0xff]
        %v219 = vld [vmem:[%s0 + $0x60] sm:$0xff]
        %v220 = vld [vmem:[%s0 + $0x68] sm:$0xff]
        %v221 = vld [vmem:[%s0 + $0x70] sm:$0xff]
        %v222 = vld [vmem:[%s0 + $0x78] sm:$0xff]
        %vm223 = vcmask 523264
        %v225 = vsel %vm223, %v207, 0
        %v228 = vsel %vm223, %v208, 0
        %v231 = vsel %vm223, %v209, 0
        %v234 = vsel %vm223, %v210, 0
        %v237 = vsel %vm223, %v211, 0
        %v240 = vsel %vm223, %v212, 0
        %v243 = vsel %vm223, %v213, 0
        %v246 = vsel %vm223, %v214, 0
        %v249 = vsel %vm223, %v215, 0
        %v252 = vsel %vm223, %v216, 0
        %v255 = vsel %vm223, %v217, 0
        %v258 = vsel %vm223, %v218, 0
        %v261 = vsel %vm223, %v219, 0
        %v264 = vsel %vm223, %v220, 0
        %v267 = vsel %vm223, %v221, 0
        %v270 = vsel %vm223, %v222, 0
        %272 = vmatpush.msra.mxu0 0.0
        %273 = vmatpush.msra.mxu0 0.0
        %274 = vmatpush.msra.mxu0 0.0
        %275 = vmatpush.msra.mxu0 0.0
        %276 = vmatpush.msra.mxu0 0.0
        %277 = vmatpush.msra.mxu0 0.0
        %278 = vmatpush.msra.mxu0 0.0
        %279 = vmatpush.msra.mxu0 0.0
        %280 = vmatpush.msra.mxu0 %v206
        %281 = vmatpush.msra.mxu0 %v205
        %282 = vmatpush.msra.mxu0 %v204
        %283 = vmatpush.msra.mxu0 %v203
        %284 = vmatpush.msra.mxu0 %v202
        %285 = vmatpush.msra.mxu0 %v201
        %286 = vmatpush.msra.mxu0 %v200
        %287 = vmatpush.msra.mxu0 %v199
        %288 = vmatmul.f32.gmra.mxu0 %v225
        %v289 = vpop.f32.mrf.mxu0
        %v290 = vadd.f32 0.0, %v289
        %291 = vmatmul.f32.gmra.mxu0 %v228
        %v292 = vpop.f32.mrf.mxu0
        %v293 = vadd.f32 0.0, %v292
        %294 = vmatmul.f32.gmra.mxu0 %v231
        %v295 = vpop.f32.mrf.mxu0
        %v296 = vadd.f32 0.0, %v295
        %297 = vmatmul.f32.gmra.mxu0 %v234
        %v298 = vpop.f32.mrf.mxu0
        %v299 = vadd.f32 0.0, %v298
        %300 = vmatmul.f32.gmra.mxu0 %v237
        %v301 = vpop.f32.mrf.mxu0
        %v302 = vadd.f32 0.0, %v301
        %303 = vmatmul.f32.gmra.mxu0 %v240
        %v304 = vpop.f32.mrf.mxu0
        %v305 = vadd.f32 0.0, %v304
        %306 = vmatmul.f32.gmra.mxu0 %v243
        %v307 = vpop.f32.mrf.mxu0
        %v308 = vadd.f32 0.0, %v307
        %309 = vmatmul.f32.gmra.mxu0 %v246
        %v310 = vpop.f32.mrf.mxu0
        %v311 = vadd.f32 0.0, %v310
        %312 = vmatmul.f32.gmra.mxu0 %v249
        %v313 = vpop.f32.mrf.mxu0
        %v314 = vadd.f32 0.0, %v313
        %315 = vmatmul.f32.gmra.mxu0 %v252
        %v316 = vpop.f32.mrf.mxu0
        %v317 = vadd.f32 0.0, %v316
        %318 = vmatmul.f32.gmra.mxu0 %v255
        %v319 = vpop.f32.mrf.mxu0
        %v320 = vadd.f32 0.0, %v319
        %321 = vmatmul.f32.gmra.mxu0 %v258
        %v322 = vpop.f32.mrf.mxu0
        %v323 = vadd.f32 0.0, %v322
        %324 = vmatmul.f32.gmra.mxu0 %v261
        %v325 = vpop.f32.mrf.mxu0
        %v326 = vadd.f32 0.0, %v325
        %327 = vmatmul.f32.gmra.mxu0 %v264
        %v328 = vpop.f32.mrf.mxu0
        %v329 = vadd.f32 0.0, %v328
        %330 = vmatmul.f32.gmra.mxu0 %v267
        %v331 = vpop.f32.mrf.mxu0
        %v332 = vadd.f32 0.0, %v331
        %333 = vmatmul.f32.gmra.mxu0 %v270
        %v334 = vpop.f32.mrf.mxu0
        %v335 = vadd.f32 0.0, %v334
        %336 = vdwg.mxu0
        %v337 = vcvt.f32.s32.to.zero.pseudo %v290
        %v338 = vcvt.f32.s32.to.zero.pseudo %v293
        %v339 = vcvt.f32.s32.to.zero.pseudo %v296
        %v340 = vcvt.f32.s32.to.zero.pseudo %v299
        %v341 = vcvt.f32.s32.to.zero.pseudo %v302
        %v342 = vcvt.f32.s32.to.zero.pseudo %v305
        %v343 = vcvt.f32.s32.to.zero.pseudo %v308
        %v344 = vcvt.f32.s32.to.zero.pseudo %v311
        %v345 = vcvt.f32.s32.to.zero.pseudo %v314
        %v346 = vcvt.f32.s32.to.zero.pseudo %v317
        %v347 = vcvt.f32.s32.to.zero.pseudo %v320
        %v348 = vcvt.f32.s32.to.zero.pseudo %v323
        %v349 = vcvt.f32.s32.to.zero.pseudo %v326
        %v350 = vcvt.f32.s32.to.zero.pseudo %v329
        %v351 = vcvt.f32.s32.to.zero.pseudo %v332
        %v352 = vcvt.f32.s32.to.zero.pseudo %v335
        %353 = vst [vmem:[#allocation2] sm:$0xff] %v337
        %354 = vst [vmem:[#allocation2 + $0x8] sm:$0xff] %v338
        %355 = vst [vmem:[#allocation2 + $0x10] sm:$0xff] %v339
        %356 = vst [vmem:[#allocation2 + $0x18] sm:$0xff] %v340
        %357 = vst [vmem:[#allocation2 + $0x20] sm:$0xff] %v341
        %358 = vst [vmem:[#allocation2 + $0x28] sm:$0xff] %v342
        %359 = vst [vmem:[#allocation2 + $0x30] sm:$0xff] %v343
        %360 = vst [vmem:[#allocation2 + $0x38] sm:$0xff] %v344
        %361 = vst [vmem:[#allocation2 + $0x40] sm:$0xff] %v345
        %362 = vst [vmem:[#allocation2 + $0x48] sm:$0xff] %v346
        %363 = vst [vmem:[#allocation2 + $0x50] sm:$0xff] %v347
        %364 = vst [vmem:[#allocation2 + $0x58] sm:$0xff] %v348
        %365 = vst [vmem:[#allocation2 + $0x60] sm:$0xff] %v349
        %366 = vst [vmem:[#allocation2 + $0x68] sm:$0xff] %v350
        %367 = vst [vmem:[#allocation2 + $0x70] sm:$0xff] %v351
        %368 = vst [vmem:[#allocation2 + $0x78] sm:$0xff] %v352
        %v369 = vadd.s32 %v182, 64
        %v370 = vadd.s32 %v182, 72
        %v371 = vadd.s32 %v182, 80
        %v372 = vadd.s32 %v182, 88
        %v373 = vadd.s32 %v182, 96
        %v374 = vadd.s32 %v182, 104
        %v375 = vadd.s32 %v182, 112
        %v376 = vadd.s32 %v182, 120
        %v377 = vld [vmem:[%s179] sm:$0x1]
        %v378 = vperm.slane %v377, 0
        %vm379 = vcmp.eq.s32.totalorder %v182, %v378
        %vm380 = vcmp.eq.s32.totalorder %v183, %v378
        %vm381 = vcmp.eq.s32.totalorder %v184, %v378
        %vm382 = vcmp.eq.s32.totalorder %v185, %v378
        %vm383 = vcmp.eq.s32.totalorder %v186, %v378
        %vm384 = vcmp.eq.s32.totalorder %v187, %v378
        %vm385 = vcmp.eq.s32.totalorder %v188, %v378
        %vm386 = vcmp.eq.s32.totalorder %v189, %v378
        %vm387 = vcmp.eq.s32.totalorder %v369, %v378
        %vm388 = vcmp.eq.s32.totalorder %v370, %v378
        %vm389 = vcmp.eq.s32.totalorder %v371, %v378
        %vm390 = vcmp.eq.s32.totalorder %v372, %v378
        %vm391 = vcmp.eq.s32.totalorder %v373, %v378
        %vm392 = vcmp.eq.s32.totalorder %v374, %v378
        %vm393 = vcmp.eq.s32.totalorder %v375, %v378
        %vm394 = vcmp.eq.s32.totalorder %v376, %v378
        %v395 = vld [vmem:[#allocation2] sm:$0xff]
        %v396 = vld [vmem:[#allocation2 + $0x8] sm:$0xff]
        %v397 = vld [vmem:[#allocation2 + $0x10] sm:$0xff]
        %v398 = vld [vmem:[#allocation2 + $0x18] sm:$0xff]
        %v399 = vld [vmem:[#allocation2 + $0x20] sm:$0xff]
        %v400 = vld [vmem:[#allocation2 + $0x28] sm:$0xff]
        %v401 = vld [vmem:[#allocation2 + $0x30] sm:$0xff]
        %v402 = vld [vmem:[#allocation2 + $0x38] sm:$0xff]
        %v403 = vld [vmem:[#allocation2 + $0x40] sm:$0xff]
        %v404 = vld [vmem:[#allocation2 + $0x48] sm:$0xff]
        %v405 = vld [vmem:[#allocation2 + $0x50] sm:$0xff]
        %v406 = vld [vmem:[#allocation2 + $0x58] sm:$0xff]
        %v407 = vld [vmem:[#allocation2 + $0x60] sm:$0xff]
        %v408 = vld [vmem:[#allocation2 + $0x68] sm:$0xff]
        %v409 = vld [vmem:[#allocation2 + $0x70] sm:$0xff]
        %v410 = vld [vmem:[#allocation2 + $0x78] sm:$0xff]
        %v411 = vsel %vm379, %v395, 0
        %v412 = vsel %vm380, %v396, 0
        %v413 = vsel %vm381, %v397, 0
        %v414 = vsel %vm382, %v398, 0
        %v415 = vsel %vm383, %v399, 0
        %v416 = vsel %vm384, %v400, 0
        %v417 = vsel %vm385, %v401, 0
        %v418 = vsel %vm386, %v402, 0
        %v419 = vsel %vm387, %v403, 0
        %v420 = vsel %vm388, %v404, 0
        %v421 = vsel %vm389, %v405, 0
        %v422 = vsel %vm390, %v406, 0
        %v423 = vsel %vm391, %v407, 0
        %v424 = vsel %vm392, %v408, 0
        %v425 = vsel %vm393, %v409, 0
        %v426 = vsel %vm394, %v410, 0
        %v427 = vadd.s32 %v411, %v415
        %v428 = vadd.s32 %v412, %v416
        %v429 = vadd.s32 %v413, %v417
        %v430 = vadd.s32 %v414, %v418
        %v431 = vadd.s32 %v427, %v419
        %v432 = vadd.s32 %v428, %v420
        %v433 = vadd.s32 %v429, %v421
        %v434 = vadd.s32 %v430, %v422
        %v435 = vadd.s32 %v431, %v423
        %v436 = vadd.s32 %v432, %v424
        %v437 = vadd.s32 %v433, %v425
        %v438 = vadd.s32 %v434, %v426
        %v439 = vadd.s32 %v435, %v436
        %v440 = vadd.s32 %v437, %v438
        %v441 = vadd.s32 %v439, %v440
        %v442 = vrot.slane %v441, 4
        %v443 = vadd.s32 %v441, %v442
        %v444 = vrot.slane %v443, 2
        %v445 = vadd.s32 %v443, %v444
        %v446 = vrot.slane %v445, 1
        %v447 = vadd.s32 %v445, %v446
        %v448 = vld [vmem:[%s179 + $0x1] sm:$0x1]
        %v449 = vperm.slane %v448, 0
        %vm450 = vcmp.eq.s32.totalorder %v182, %v449
        %vm451 = vcmp.eq.s32.totalorder %v183, %v449
        %vm452 = vcmp.eq.s32.totalorder %v184, %v449
        %vm453 = vcmp.eq.s32.totalorder %v185, %v449
        %vm454 = vcmp.eq.s32.totalorder %v186, %v449
        %vm455 = vcmp.eq.s32.totalorder %v187, %v449
        %vm456 = vcmp.eq.s32.totalorder %v188, %v449
        %vm457 = vcmp.eq.s32.totalorder %v189, %v449
        %vm458 = vcmp.eq.s32.totalorder %v369, %v449
        %vm459 = vcmp.eq.s32.totalorder %v370, %v449
        %vm460 = vcmp.eq.s32.totalorder %v371, %v449
        %vm461 = vcmp.eq.s32.totalorder %v372, %v449
        %vm462 = vcmp.eq.s32.totalorder %v373, %v449
        %vm463 = vcmp.eq.s32.totalorder %v374, %v449
        %vm464 = vcmp.eq.s32.totalorder %v375, %v449
        %vm465 = vcmp.eq.s32.totalorder %v376, %v449
        %v466 = vsel %vm450, %v395, 0
        %v467 = vsel %vm451, %v396, 0
        %v468 = vsel %vm452, %v397, 0
        %v469 = vsel %vm453, %v398, 0
        %v470 = vsel %vm454, %v399, 0
        %v471 = vsel %vm455, %v400, 0
        %v472 = vsel %vm456, %v401, 0
        %v473 = vsel %vm457, %v402, 0
        %v474 = vsel %vm458, %v403, 0
        %v475 = vsel %vm459, %v404, 0
        %v476 = vsel %vm460, %v405, 0
        %v477 = vsel %vm461, %v406, 0
        %v478 = vsel %vm462, %v407, 0
        %v479 = vsel %vm463, %v408, 0
        %v480 = vsel %vm464, %v409, 0
        %v481 = vsel %vm465, %v410, 0
        %v482 = vadd.s32 %v466, %v470
        %v483 = vadd.s32 %v467, %v471
        %v484 = vadd.s32 %v468, %v472
        %v485 = vadd.s32 %v469, %v473
        %v486 = vadd.s32 %v482, %v474
        %v487 = vadd.s32 %v483, %v475
        %v488 = vadd.s32 %v484, %v476
        %v489 = vadd.s32 %v485, %v477
        %v490 = vadd.s32 %v486, %v478
        %v491 = vadd.s32 %v487, %v479
        %v492 = vadd.s32 %v488, %v480
        %v493 = vadd.s32 %v489, %v481
        %v494 = vadd.s32 %v490, %v491
        %v495 = vadd.s32 %v492, %v493
        %v496 = vadd.s32 %v494, %v495
        %v497 = vrot.slane %v496, 4
        %v498 = vadd.s32 %v496, %v497
        %v499 = vrot.slane %v498, 2
        %v500 = vadd.s32 %v498, %v499
        %v501 = vrot.slane %v500, 1
        %v502 = vadd.s32 %v500, %v501
        %v503 = vld [vmem:[%s179 + $0x2] sm:$0x1]
        %v504 = vperm.slane %v503, 0
        %vm505 = vcmp.eq.s32.totalorder %v182, %v504
        %vm506 = vcmp.eq.s32.totalorder %v183, %v504
        %vm507 = vcmp.eq.s32.totalorder %v184, %v504
        %vm508 = vcmp.eq.s32.totalorder %v185, %v504
        %vm509 = vcmp.eq.s32.totalorder %v186, %v504
        %vm510 = vcmp.eq.s32.totalorder %v187, %v504
        %vm511 = vcmp.eq.s32.totalorder %v188, %v504
        %vm512 = vcmp.eq.s32.totalorder %v189, %v504
        %vm513 = vcmp.eq.s32.totalorder %v369, %v504
        %vm514 = vcmp.eq.s32.totalorder %v370, %v504
        %vm515 = vcmp.eq.s32.totalorder %v371, %v504
        %vm516 = vcmp.eq.s32.totalorder %v372, %v504
        %vm517 = vcmp.eq.s32.totalorder %v373, %v504
        %vm518 = vcmp.eq.s32.totalorder %v374, %v504
        %vm519 = vcmp.eq.s32.totalorder %v375, %v504
        %vm520 = vcmp.eq.s32.totalorder %v376, %v504
        %v521 = vsel %vm505, %v395, 0
        %v522 = vsel %vm506, %v396, 0
        %v523 = vsel %vm507, %v397, 0
        %v524 = vsel %vm508, %v398, 0
        %v525 = vsel %vm509, %v399, 0
        %v526 = vsel %vm510, %v400, 0
        %v527 = vsel %vm511, %v401, 0
        %v528 = vsel %vm512, %v402, 0
        %v529 = vsel %vm513, %v403, 0
        %v530 = vsel %vm514, %v404, 0
        %v531 = vsel %vm515, %v405, 0
        %v532 = vsel %vm516, %v406, 0
        %v533 = vsel %vm517, %v407, 0
        %v534 = vsel %vm518, %v408, 0
        %v535 = vsel %vm519, %v409, 0
        %v536 = vsel %vm520, %v410, 0
        %v537 = vadd.s32 %v521, %v525
        %v538 = vadd.s32 %v522, %v526
        %v539 = vadd.s32 %v523, %v527
        %v540 = vadd.s32 %v524, %v528
        %v541 = vadd.s32 %v537, %v529
        %v542 = vadd.s32 %v538, %v530
        %v543 = vadd.s32 %v539, %v531
        %v544 = vadd.s32 %v540, %v532
        %v545 = vadd.s32 %v541, %v533
        %v546 = vadd.s32 %v542, %v534
        %v547 = vadd.s32 %v543, %v535
        %v548 = vadd.s32 %v544, %v536
        %v549 = vadd.s32 %v545, %v546
        %v550 = vadd.s32 %v547, %v548
        %v551 = vadd.s32 %v549, %v550
        %v552 = vrot.slane %v551, 4
        %v553 = vadd.s32 %v551, %v552
        %v554 = vrot.slane %v553, 2
        %v555 = vadd.s32 %v553, %v554
        %v556 = vrot.slane %v555, 1
        %v557 = vadd.s32 %v555, %v556
        %v558 = vld [vmem:[%s179 + $0x3] sm:$0x1]
        %v559 = vperm.slane %v558, 0
        %vm560 = vcmp.eq.s32.totalorder %v182, %v559
        %vm561 = vcmp.eq.s32.totalorder %v183, %v559
        %vm562 = vcmp.eq.s32.totalorder %v184, %v559
        %vm563 = vcmp.eq.s32.totalorder %v185, %v559
        %vm564 = vcmp.eq.s32.totalorder %v186, %v559
        %vm565 = vcmp.eq.s32.totalorder %v187, %v559
        %vm566 = vcmp.eq.s32.totalorder %v188, %v559
        %vm567 = vcmp.eq.s32.totalorder %v189, %v559
        %vm568 = vcmp.eq.s32.totalorder %v369, %v559
        %vm569 = vcmp.eq.s32.totalorder %v370, %v559
        %vm570 = vcmp.eq.s32.totalorder %v371, %v559
        %vm571 = vcmp.eq.s32.totalorder %v372, %v559
        %vm572 = vcmp.eq.s32.totalorder %v373, %v559
        %vm573 = vcmp.eq.s32.totalorder %v374, %v559
        %vm574 = vcmp.eq.s32.totalorder %v375, %v559
        %vm575 = vcmp.eq.s32.totalorder %v376, %v559
        %v576 = vsel %vm560, %v395, 0
        %v577 = vsel %vm561, %v396, 0
        %v578 = vsel %vm562, %v397, 0
        %v579 = vsel %vm563, %v398, 0
        %v580 = vsel %vm564, %v399, 0
        %v581 = vsel %vm565, %v400, 0
        %v582 = vsel %vm566, %v401, 0
        %v583 = vsel %vm567, %v402, 0
        %v584 = vsel %vm568, %v403, 0
        %v585 = vsel %vm569, %v404, 0
        %v586 = vsel %vm570, %v405, 0
        %v587 = vsel %vm571, %v406, 0
        %v588 = vsel %vm572, %v407, 0
        %v589 = vsel %vm573, %v408, 0
        %v590 = vsel %vm574, %v409, 0
        %v591 = vsel %vm575, %v410, 0
        %v592 = vadd.s32 %v576, %v580
        %v593 = vadd.s32 %v577, %v581
        %v594 = vadd.s32 %v578, %v582
        %v595 = vadd.s32 %v579, %v583
        %v596 = vadd.s32 %v592, %v584
        %v597 = vadd.s32 %v593, %v585
        %v598 = vadd.s32 %v594, %v586
        %v599 = vadd.s32 %v595, %v587
        %v600 = vadd.s32 %v596, %v588
        %v601 = vadd.s32 %v597, %v589
        %v602 = vadd.s32 %v598, %v590
        %v603 = vadd.s32 %v599, %v591
        %v604 = vadd.s32 %v600, %v601
        %v605 = vadd.s32 %v602, %v603
        %v606 = vadd.s32 %v604, %v605
        %v607 = vrot.slane %v606, 4
        %v608 = vadd.s32 %v606, %v607
        %v609 = vrot.slane %v608, 2
        %v610 = vadd.s32 %v608, %v609
        %v611 = vrot.slane %v610, 1
        %v612 = vadd.s32 %v610, %v611
        %v613 = vld [vmem:[%s179 + $0x4] sm:$0x1]
        %v614 = vperm.slane %v613, 0
        %vm615 = vcmp.eq.s32.totalorder %v182, %v614
        %vm616 = vcmp.eq.s32.totalorder %v183, %v614
        %vm617 = vcmp.eq.s32.totalorder %v184, %v614
        %vm618 = vcmp.eq.s32.totalorder %v185, %v614
        %vm619 = vcmp.eq.s32.totalorder %v186, %v614
        %vm620 = vcmp.eq.s32.totalorder %v187, %v614
        %vm621 = vcmp.eq.s32.totalorder %v188, %v614
        %vm622 = vcmp.eq.s32.totalorder %v189, %v614
        %vm623 = vcmp.eq.s32.totalorder %v369, %v614
        %vm624 = vcmp.eq.s32.totalorder %v370, %v614
        %vm625 = vcmp.eq.s32.totalorder %v371, %v614
        %vm626 = vcmp.eq.s32.totalorder %v372, %v614
        %vm627 = vcmp.eq.s32.totalorder %v373, %v614
        %vm628 = vcmp.eq.s32.totalorder %v374, %v614
        %vm629 = vcmp.eq.s32.totalorder %v375, %v614
        %vm630 = vcmp.eq.s32.totalorder %v376, %v614
        %v631 = vsel %vm615, %v395, 0
        %v632 = vsel %vm616, %v396, 0
        %v633 = vsel %vm617, %v397, 0
        %v634 = vsel %vm618, %v398, 0
        %v635 = vsel %vm619, %v399, 0
        %v636 = vsel %vm620, %v400, 0
        %v637 = vsel %vm621, %v401, 0
        %v638 = vsel %vm622, %v402, 0
        %v639 = vsel %vm623, %v403, 0
        %v640 = vsel %vm624, %v404, 0
        %v641 = vsel %vm625, %v405, 0
        %v642 = vsel %vm626, %v406, 0
        %v643 = vsel %vm627, %v407, 0
        %v644 = vsel %vm628, %v408, 0
        %v645 = vsel %vm629, %v409, 0
        %v646 = vsel %vm630, %v410, 0
        %v647 = vadd.s32 %v631, %v635
        %v648 = vadd.s32 %v632, %v636
        %v649 = vadd.s32 %v633, %v637
        %v650 = vadd.s32 %v634, %v638
        %v651 = vadd.s32 %v647, %v639
        %v652 = vadd.s32 %v648, %v640
        %v653 = vadd.s32 %v649, %v641
        %v654 = vadd.s32 %v650, %v642
        %v655 = vadd.s32 %v651, %v643
        %v656 = vadd.s32 %v652, %v644
        %v657 = vadd.s32 %v653, %v645
        %v658 = vadd.s32 %v654, %v646
        %v659 = vadd.s32 %v655, %v656
        %v660 = vadd.s32 %v657, %v658
        %v661 = vadd.s32 %v659, %v660
        %v662 = vrot.slane %v661, 4
        %v663 = vadd.s32 %v661, %v662
        %v664 = vrot.slane %v663, 2
        %v665 = vadd.s32 %v663, %v664
        %v666 = vrot.slane %v665, 1
        %v667 = vadd.s32 %v665, %v666
        %v668 = vld [vmem:[%s179 + $0x5] sm:$0x1]
        %v669 = vperm.slane %v668, 0
        %vm670 = vcmp.eq.s32.totalorder %v182, %v669
        %vm671 = vcmp.eq.s32.totalorder %v183, %v669
        %vm672 = vcmp.eq.s32.totalorder %v184, %v669
        %vm673 = vcmp.eq.s32.totalorder %v185, %v669
        %vm674 = vcmp.eq.s32.totalorder %v186, %v669
        %vm675 = vcmp.eq.s32.totalorder %v187, %v669
        %vm676 = vcmp.eq.s32.totalorder %v188, %v669
        %vm677 = vcmp.eq.s32.totalorder %v189, %v669
        %vm678 = vcmp.eq.s32.totalorder %v369, %v669
        %vm679 = vcmp.eq.s32.totalorder %v370, %v669
        %vm680 = vcmp.eq.s32.totalorder %v371, %v669
        %vm681 = vcmp.eq.s32.totalorder %v372, %v669
        %vm682 = vcmp.eq.s32.totalorder %v373, %v669
        %vm683 = vcmp.eq.s32.totalorder %v374, %v669
        %vm684 = vcmp.eq.s32.totalorder %v375, %v669
        %vm685 = vcmp.eq.s32.totalorder %v376, %v669
        %v686 = vsel %vm670, %v395, 0
        %v687 = vsel %vm671, %v396, 0
        %v688 = vsel %vm672, %v397, 0
        %v689 = vsel %vm673, %v398, 0
        %v690 = vsel %vm674, %v399, 0
        %v691 = vsel %vm675, %v400, 0
        %v692 = vsel %vm676, %v401, 0
        %v693 = vsel %vm677, %v402, 0
        %v694 = vsel %vm678, %v403, 0
        %v695 = vsel %vm679, %v404, 0
        %v696 = vsel %vm680, %v405, 0
        %v697 = vsel %vm681, %v406, 0
        %v698 = vsel %vm682, %v407, 0
        %v699 = vsel %vm683, %v408, 0
        %v700 = vsel %vm684, %v409, 0
        %v701 = vsel %vm685, %v410, 0
        %v702 = vadd.s32 %v686, %v690
        %v703 = vadd.s32 %v687, %v691
        %v704 = vadd.s32 %v688, %v692
        %v705 = vadd.s32 %v689, %v693
        %v706 = vadd.s32 %v702, %v694
        %v707 = vadd.s32 %v703, %v695
        %v708 = vadd.s32 %v704, %v696
        %v709 = vadd.s32 %v705, %v697
        %v710 = vadd.s32 %v706, %v698
        %v711 = vadd.s32 %v707, %v699
        %v712 = vadd.s32 %v708, %v700
        %v713 = vadd.s32 %v709, %v701
        %v714 = vadd.s32 %v710, %v711
        %v715 = vadd.s32 %v712, %v713
        %v716 = vadd.s32 %v714, %v715
        %v717 = vrot.slane %v716, 4
        %v718 = vadd.s32 %v716, %v717
        %v719 = vrot.slane %v718, 2
        %v720 = vadd.s32 %v718, %v719
        %v721 = vrot.slane %v720, 1
        %v722 = vadd.s32 %v720, %v721
        %v723 = vld [vmem:[%s179 + $0x6] sm:$0x1]
        %v724 = vperm.slane %v723, 0
        %vm725 = vcmp.eq.s32.totalorder %v182, %v724
        %vm726 = vcmp.eq.s32.totalorder %v183, %v724
        %vm727 = vcmp.eq.s32.totalorder %v184, %v724
        %vm728 = vcmp.eq.s32.totalorder %v185, %v724
        %vm729 = vcmp.eq.s32.totalorder %v186, %v724
        %vm730 = vcmp.eq.s32.totalorder %v187, %v724
        %vm731 = vcmp.eq.s32.totalorder %v188, %v724
        %vm732 = vcmp.eq.s32.totalorder %v189, %v724
        %vm733 = vcmp.eq.s32.totalorder %v369, %v724
        %vm734 = vcmp.eq.s32.totalorder %v370, %v724
        %vm735 = vcmp.eq.s32.totalorder %v371, %v724
        %vm736 = vcmp.eq.s32.totalorder %v372, %v724
        %vm737 = vcmp.eq.s32.totalorder %v373, %v724
        %vm738 = vcmp.eq.s32.totalorder %v374, %v724
        %vm739 = vcmp.eq.s32.totalorder %v375, %v724
        %vm740 = vcmp.eq.s32.totalorder %v376, %v724
        %v741 = vsel %vm725, %v395, 0
        %v742 = vsel %vm726, %v396, 0
        %v743 = vsel %vm727, %v397, 0
        %v744 = vsel %vm728, %v398, 0
        %v745 = vsel %vm729, %v399, 0
        %v746 = vsel %vm730, %v400, 0
        %v747 = vsel %vm731, %v401, 0
        %v748 = vsel %vm732, %v402, 0
        %v749 = vsel %vm733, %v403, 0
        %v750 = vsel %vm734, %v404, 0
        %v751 = vsel %vm735, %v405, 0
        %v752 = vsel %vm736, %v406, 0
        %v753 = vsel %vm737, %v407, 0
        %v754 = vsel %vm738, %v408, 0
        %v755 = vsel %vm739, %v409, 0
        %v756 = vsel %vm740, %v410, 0
        %v757 = vadd.s32 %v741, %v745
        %v758 = vadd.s32 %v742, %v746
        %v759 = vadd.s32 %v743, %v747
        %v760 = vadd.s32 %v744, %v748
        %v761 = vadd.s32 %v757, %v749
        %v762 = vadd.s32 %v758, %v750
        %v763 = vadd.s32 %v759, %v751
        %v764 = vadd.s32 %v760, %v752
        %v765 = vadd.s32 %v761, %v753
        %v766 = vadd.s32 %v762, %v754
        %v767 = vadd.s32 %v763, %v755
        %v768 = vadd.s32 %v764, %v756
        %v769 = vadd.s32 %v765, %v766
        %v770 = vadd.s32 %v767, %v768
        %v771 = vadd.s32 %v769, %v770
        %v772 = vrot.slane %v771, 4
        %v773 = vadd.s32 %v771, %v772
        %v774 = vrot.slane %v773, 2
        %v775 = vadd.s32 %v773, %v774
        %v776 = vrot.slane %v775, 1
        %v777 = vadd.s32 %v775, %v776
        %v778 = vld [vmem:[%s179 + $0x7] sm:$0x1]
        %v779 = vperm.slane %v778, 0
        %vm780 = vcmp.eq.s32.totalorder %v182, %v779
        %vm781 = vcmp.eq.s32.totalorder %v183, %v779
        %vm782 = vcmp.eq.s32.totalorder %v184, %v779
        %vm783 = vcmp.eq.s32.totalorder %v185, %v779
        %vm784 = vcmp.eq.s32.totalorder %v186, %v779
        %vm785 = vcmp.eq.s32.totalorder %v187, %v779
        %vm786 = vcmp.eq.s32.totalorder %v188, %v779
        %vm787 = vcmp.eq.s32.totalorder %v189, %v779
        %vm788 = vcmp.eq.s32.totalorder %v369, %v779
        %vm789 = vcmp.eq.s32.totalorder %v370, %v779
        %vm790 = vcmp.eq.s32.totalorder %v371, %v779
        %vm791 = vcmp.eq.s32.totalorder %v372, %v779
        %vm792 = vcmp.eq.s32.totalorder %v373, %v779
        %vm793 = vcmp.eq.s32.totalorder %v374, %v779
        %vm794 = vcmp.eq.s32.totalorder %v375, %v779
        %vm795 = vcmp.eq.s32.totalorder %v376, %v779
        %v796 = vsel %vm780, %v395, 0
        %v797 = vsel %vm781, %v396, 0
        %v798 = vsel %vm782, %v397, 0
        %v799 = vsel %vm783, %v398, 0
        %v800 = vsel %vm784, %v399, 0
        %v801 = vsel %vm785, %v400, 0
        %v802 = vsel %vm786, %v401, 0
        %v803 = vsel %vm787, %v402, 0
        %v804 = vsel %vm788, %v403, 0
        %v805 = vsel %vm789, %v404, 0
        %v806 = vsel %vm790, %v405, 0
        %v807 = vsel %vm791, %v406, 0
        %v808 = vsel %vm792, %v407, 0
        %v809 = vsel %vm793, %v408, 0
        %v810 = vsel %vm794, %v409, 0
        %v811 = vsel %vm795, %v410, 0
        %v812 = vadd.s32 %v796, %v800
        %v813 = vadd.s32 %v797, %v801
        %v814 = vadd.s32 %v798, %v802
        %v815 = vadd.s32 %v799, %v803
        %v816 = vadd.s32 %v812, %v804
        %v817 = vadd.s32 %v813, %v805
        %v818 = vadd.s32 %v814, %v806
        %v819 = vadd.s32 %v815, %v807
        %v820 = vadd.s32 %v816, %v808
        %v821 = vadd.s32 %v817, %v809
        %v822 = vadd.s32 %v818, %v810
        %v823 = vadd.s32 %v819, %v811
        %v824 = vadd.s32 %v820, %v821
        %v825 = vadd.s32 %v822, %v823
        %v826 = vadd.s32 %v824, %v825
        %v827 = vrot.slane %v826, 4
        %v828 = vadd.s32 %v826, %v827
        %v829 = vrot.slane %v828, 2
        %v830 = vadd.s32 %v828, %v829
        %v831 = vrot.slane %v830, 1
        %v832 = vadd.s32 %v830, %v831
        %vm833 = vcmask 1040384
        %v834 = vsel %vm833, %v447, %v502
        %vm835 = vcmask 1041408
        %v836 = vsel %vm835, %v834, %v557
        %vm837 = vcmask 1042432
        %v838 = vsel %vm837, %v836, %v612
        %vm839 = vcmask 1043456
        %v840 = vsel %vm839, %v838, %v667
        %vm841 = vcmask 1044480
        %v842 = vsel %vm841, %v840, %v722
        %vm843 = vcmask 1045504
        %v844 = vsel %vm843, %v842, %v777
        %vm845 = vcmask 1046528
        %v846 = vsel %vm845, %v844, %v832
        %847 = vst [vmem:[%s172] sm:$0xff] %v846
        %s848 = sand.u32 %s98, 1
        %s849 = scalar_lea.sflag [#allocation4], %s848
        %s850 = sand.u32 %s98, 1
        %s851 = smul.addr %s850, 8
        %s852 = scalar_lea.vmem [#allocation3], %s851
        // Predicated region
        $region33: #{tpu_custom_call.1} parent=31 // pred_check
          %p853 = pneg %p108
        $region34: #{tpu_custom_call.1} parent=31 // pred_check_branch
          %855 = sbr.rel (%p853) target = $region36
        $region35: #{tpu_custom_call.1} parent=31 // pred_region
          %857 = vsyncadd %s849, 0
          %s858 = smul.addr %s17, 8
          %s859 = scalar_lea.hbm %s3, %s858
          %s861 = sshll.u32 %s852, 4
          %s862 = int_to_ptr.vmem [resolvable:$true] %s861
          %s863 = sshll.u32 %s859, 4
          %s864 = int_to_ptr.hbm [resolvable:$true] %s863
          %866 = dma.vmem_to_hbm [thread:$0]  %s862, 128, %s864, %s849
        $region36: #{tpu_custom_call.1} parent=31 // pred_fallthru
          _
      $region32: #{tpu_custom_call.1} parent=5 // pred_fallthru
        _
      %p867 = scmp.le.s32.totalorder 2, %s12
      // Predicated region
      $region37: #{tpu_custom_call.1} parent=5 // pred_check
        %p868 = pneg %p867
      $region38: #{tpu_custom_call.1} parent=5 // pred_check_branch
        %870 = sbr.rel (%p868) target = $region40
      $region39: #{tpu_custom_call.1} parent=5 // pred_region
        %s871 = ssub.s32 %s12, 2
        // Predicated region
        $region41: #{tpu_custom_call.1} parent=39 // pred_check
          %p872 = pneg %p114
        $region42: #{tpu_custom_call.1} parent=39 // pred_check_branch
          %874 = sbr.rel (%p872) target = $region44
        $region43: #{tpu_custom_call.1} parent=39 // pred_region
          %s875 = sand.u32 %s99, 1
          %s876 = scalar_lea.sflag [#allocation4], %s875
          %s877 = sand.u32 %s99, 1
          %s878 = smul.addr %s877, 8
          %s879 = scalar_lea.vmem [#allocation3], %s878
          %881 = dma.done %s876, 128
        $region44: #{tpu_custom_call.1} parent=39 // pred_fallthru
          _
      $region40: #{tpu_custom_call.1} parent=5 // pred_fallthru
        _
    $region6: #{tpu_custom_call.1} parent=1 // loop_footer
      %s16 = sadd.s32 1, %s12
    $region7: #{tpu_custom_call.1} parent=1 // loop_footer_branch
      %11 = sbr.rel target = $region3
    $region8: #{tpu_custom_call.1} parent=1 // loop_exit
      _
    %882 = vsyncpa [#allocation4], 1
    %s883 = scalar_lea.sflag [#allocation4], 1
    %884 = vsyncpa %s883, 1

</llo_original>
